<compile_context>
chip_gen: v7x
topology: tpu7x:2x2x1
jax: 0.10.0
libtpu: 0.0.40
codegen_flags: <defaults>
</compile_context>

<pallas_src>
import jax
import jax.numpy as jnp
from jax import lax
from jax.experimental import pallas as pl
from jax.experimental.pallas import tpu as pltpu


def _round_up(x: int, m: int) -> int:
    return ((x + m - 1) // m) * m


def _linear_kernel(x_ref, w_ref, b_ref, o_ref):
    # x_ref: (TM, K)   w_ref: (Npad, K)   b_ref: (1, Npad)   o_ref: (TM, Npad)
    # trans_b matmul: contract x's K against w's K -> (TM, Npad), f32 accumulate.
    acc = lax.dot_general(
        x_ref[...], w_ref[...],
        dimension_numbers=(((1,), (1,)), ((), ())),
        preferred_element_type=jnp.float32,
    )
    # Bias add rides a free VPU slot; keep it in f32 before the final cast.
    o_ref[...] = (acc + b_ref[...]).astype(o_ref.dtype)


def categorical_action_head(x, weight, bias, *, compute_dtype=None, block_m=512):
    """Forward pass of CategoricalActionHead.

    x:      (..., insize)
    weight: (num_actions, insize)   -- PyTorch nn.Linear convention (NOT transposed)
    bias:   (num_actions,)
    compute_dtype: optional dtype (e.g. jnp.bfloat16) to cast x/weight to for
        the MXU; accumulation and bias add remain f32, output keeps x's dtype.
    returns (..., num_actions) logits (no softmax, matching the module).
    """
    insize = x.shape[-1]
    num_actions = weight.shape[0]
    lead = x.shape[:-1]
    m = 1
    for d in lead:
        m *= d

    out_dtype = x.dtype

    if compute_dtype is not None:
        x = x.astype(compute_dtype)
        weight = weight.astype(compute_dtype)

    # Lane-dense output: pad N (num_actions) up to a multiple of 128.
    n_pad = _round_up(num_actions, 128)
    if n_pad != num_actions:
        weight = jnp.pad(weight, ((0, n_pad - num_actions), (0, 0)))
        bias = jnp.pad(bias, (0, n_pad - num_actions))

    x2d = x.reshape(m, insize)
    b2d = bias.reshape(1, n_pad).astype(jnp.float32)

    # Row-tile size: sublane-aligned, capped at block_m (sized well within VMEM
    # even on v7x's 64 MiB: ~2*TM*K + Npad*K + 2*TM*Npad elements).
    tm = min(block_m, _round_up(m, 8))
    grid_m = pl.cdiv(m, tm)

    cost = pl.CostEstimate(
        flops=2 * m * insize * n_pad,
        transcendentals=0,
        bytes_accessed=(x2d.size * x2d.dtype.itemsize
                        + weight.size * weight.dtype.itemsize
                        + b2d.size * b2d.dtype.itemsize
                        + m * n_pad * jnp.dtype(out_dtype).itemsize),
    )

    out2d = pl.pallas_call(
        _linear_kernel,
        out_shape=jax.ShapeDtypeStruct((m, n_pad), out_dtype),
        grid_spec=pl.GridSpec(
            grid=(grid_m,),
            in_specs=[
                pl.BlockSpec((tm, insize), lambda i: (i, 0)),     # x tile (pipelined)
                pl.BlockSpec((n_pad, insize), lambda i: (0, 0)),  # W resident
                pl.BlockSpec((1, n_pad), lambda i: (0, 0)),       # bias resident
            ],
            out_specs=pl.BlockSpec((tm, n_pad), lambda i: (i, 0)),
        ),
        compiler_params=pltpu.CompilerParams(
            dimension_semantics=("parallel",)),
        cost_estimate=cost,
    )(x2d, weight, b2d)

    # Slice off padded logit columns before any downstream sampling.
    out2d = out2d[:, :num_actions]
    return out2d.reshape(*lead, num_actions)


def orthogonal_init(key, shape, gain):
    """Deterministic orthogonal init matching nn.init.orthogonal_ semantics."""
    rows, cols = shape
    flat_shape = (max(rows, cols), min(rows, cols))
    a = jax.random.normal(key, flat_shape, dtype=jnp.float32)
    q, r = jnp.linalg.qr(a)
    # sign correction so the decomposition is unique (as in PyTorch)
    d = jnp.sign(jnp.diagonal(r))
    q = q * d[None, :]
    if rows < cols:
        q = q.T
    return gain * q[:rows, :cols]


if __name__ == "__main__":
    key = jax.random.PRNGKey(0)
    k_x, k_w = jax.random.split(key)

    batch, seq, insize, num_actions = 2, 8, 32, 16
    init_scale = 0.1

    # Parameters (deterministic, matching nn.Linear(insize, num_actions) shapes)
    weight = orthogonal_init(k_w, (num_actions, insize), gain=init_scale)  # (N, K)
    bias = jnp.zeros((num_actions,), dtype=jnp.float32)

    # Input: (batch, seq, insize), as a typical policy-head input
    x = jax.random.normal(k_x, (batch, seq, insize), dtype=jnp.float32)

    # f32 path (default)
    out = categorical_action_head(x, weight, bias)
    out = jax.block_until_ready(out)

    ref = x @ weight.T + bias
    assert out.shape == (batch, seq, num_actions)
    assert jnp.allclose(out, ref, atol=1e-5, rtol=1e-5)

    # bf16-input fast path (v5e/v6e bandwidth/MXU optimization), f32 accumulate.
    out_bf16 = categorical_action_head(x, weight, bias, compute_dtype=jnp.bfloat16)
    out_bf16 = jax.block_until_ready(out_bf16)
    assert out_bf16.shape == (batch, seq, num_actions)
    assert jnp.allclose(out_bf16, ref, atol=3e-2, rtol=3e-2)

    print("KERNEL_OK")
</pallas_src>

<mosaic_0001>
module attributes {stable_mosaic.version = 11 : i64} {
  func.func @_linear_kernel(%arg0: i32, %arg1: memref<16x32xf32, #tpu.memory_space<vmem>>, %arg2: memref<128x32xf32, #tpu.memory_space<vmem>>, %arg3: memref<1x128xf32, #tpu.memory_space<vmem>>, %arg4: memref<16x128xf32, #tpu.memory_space<vmem>>) attributes {dimension_semantics = [#tpu.dimension_semantics<parallel>], iteration_bounds = array<i64: 1>, scalar_prefetch = 0 : i64, scratch_operands = 0 : i64, tpu.core_type = #tpu.core_type<tc>, window_params = [{transform_indices = @transform_0, window_bounds = array<i64: 16, 32>}, {pipeline_mode = #tpu.pipeline_mode<synchronous>, transform_indices = @transform_1, window_bounds = array<i64: 128, 32>}, {pipeline_mode = #tpu.pipeline_mode<synchronous>, transform_indices = @transform_2, window_bounds = array<i64: 1, 128>}, {transform_indices = @transform_3, window_bounds = array<i64: 16, 128>}]} {
    %c0 = arith.constant 0 : index
    %c0_0 = arith.constant 0 : index
    %0 = vector.load %arg1[%c0, %c0_0] : memref<16x32xf32, #tpu.memory_space<vmem>>, vector<16x32xf32>
    %c0_1 = arith.constant 0 : index
    %c0_2 = arith.constant 0 : index
    %1 = vector.load %arg2[%c0_1, %c0_2] : memref<128x32xf32, #tpu.memory_space<vmem>>, vector<128x32xf32>
    %cst = arith.constant dense<0.000000e+00> : vector<16x128xf32>
    %2 = tpu.matmul %0, %1, %cst {dimension_numbers = #tpu.dot_dimension_numbers<[1], [1], [0], [0], [0, 0, 1, 0], [], []>} : vector<16x32xf32>, vector<128x32xf32>, vector<16x128xf32> -> vector<16x128xf32>
    %c0_3 = arith.constant 0 : index
    %c0_4 = arith.constant 0 : index
    %3 = vector.load %arg3[%c0_3, %c0_4] : memref<1x128xf32, #tpu.memory_space<vmem>>, vector<1x128xf32>
    %4 = vector.broadcast %3 : vector<1x128xf32> to vector<16x128xf32>
    %5 = arith.addf %2, %4 : vector<16x128xf32>
    %c0_5 = arith.constant 0 : index
    %c0_6 = arith.constant 0 : index
    %6 = vector.load %arg4[%c0_5, %c0_6] : memref<16x128xf32, #tpu.memory_space<vmem>>, vector<16x128xf32>
    tpu.vector_store %arg4[%c0_5, %c0_6], %5 {strides = array<i32>} : memref<16x128xf32, #tpu.memory_space<vmem>>, vector<16x128xf32>,
    return
  }
  func.func @transform_0(%arg0: i32) -> (i32, i32) {
    %c0_i32 = arith.constant 0 : i32
    %c0_i32_0 = arith.constant 0 : i32
    return %arg0, %c0_i32 : i32, i32
  }
  func.func @transform_1(%arg0: i32) -> (i32, i32) {
    %c0_i32 = arith.constant 0 : i32
    %c0_i32_0 = arith.constant 0 : i32
    %c0_i32_1 = arith.constant 0 : i32
    return %c0_i32, %c0_i32_0 : i32, i32
  }
  func.func @transform_2(%arg0: i32) -> (i32, i32) {
    %c0_i32 = arith.constant 0 : i32
    %c0_i32_0 = arith.constant 0 : i32
    %c0_i32_1 = arith.constant 0 : i32
    return %c0_i32, %c0_i32_0 : i32, i32
  }
  func.func @transform_3(%arg0: i32) -> (i32, i32) {
    %c0_i32 = arith.constant 0 : i32
    %c0_i32_0 = arith.constant 0 : i32
    return %arg0, %c0_i32 : i32, i32
  }
}

</mosaic_0001>

<llo_original>
// kernel: tpu_custom_call.1
$region0: #{tpu_custom_call.1}
  #allocation0 [shape = 'u32[]', space=smem, size = 0x4, offset = 0x4, fixed_abs, tag = 'smem constant byte address 0x4 - core index']
  #allocation1 [shape = 'u32[144,128]{1,0:T(1,128)}', space=vmem, size = 0x12000, scoped, tag = 'internal scratch']
  %s0 = inlined_call_operand.vmem [shape: f32[16,32], index: 0, kind: input, shape index: {}]
  %s1 = inlined_call_operand.vmem [shape: f32[128,32], index: 1, kind: input, shape index: {}]
  %s2 = inlined_call_operand.vmem [shape: f32[1,128], index: 2, kind: input, shape index: {}]
  %s3 = inlined_call_operand.hbm [shape: f32[16,128], index: 3, kind: output, shape index: {}]
  %s4 = sld [smem:[#allocation0]]
  $region22: #{tpu_custom_call.1} parent=0
    _
  %s6 = ssub.s32 1, %s4
  %s7 = scalar_select 0, %s6, %s4
  $region1: #{tpu_custom_call.1} parent=0
    #allocation2 [shape = 'u8[8192]{0}', space=vmem, size = 0x2000, scoped, tag = 'output window, operand 0, single buffered']
    #allocation3 [shape = 's32[1]{0}', space=sflag, size = 0x4, scoped, tag = 'scoped memory for tpu_custom_call.1']
    %8 = vsyncpa [#allocation3], 0
    // Predicated region
    $region2: #{tpu_custom_call.1} parent=1 // pred_check
      _
    $region3: #{tpu_custom_call.1} parent=1 // pred_check_branch
      %10 = sbr.rel (0) target = $region5
    $region4: #{tpu_custom_call.1} parent=1 // pred_region
      _
    $region5: #{tpu_custom_call.1} parent=1 // pred_fallthru
      _
    // Predicated region
    $region6: #{tpu_custom_call.1} parent=1 // pred_check
      _
    $region7: #{tpu_custom_call.1} parent=1 // pred_check_branch
      %12 = sbr.rel (0) target = $region9
    $region8: #{tpu_custom_call.1} parent=1 // pred_region
      _
    $region9: #{tpu_custom_call.1} parent=1 // pred_fallthru
      _
    // Predicated region
    $region10: #{tpu_custom_call.1} parent=1 // pred_check
      _
    $region11: #{tpu_custom_call.1} parent=1 // pred_check_branch
      %14 = sbr.rel (0) target = $region13
    $region12: #{tpu_custom_call.1} parent=1 // pred_region
      _
    $region13: #{tpu_custom_call.1} parent=1 // pred_fallthru
      _
    %v15 = vld [vmem:[%s0] sm:$0xff]
    %v16 = vld [vmem:[%s0 + $0x8] sm:$0xff]
    %v17 = vld [vmem:[%s1] sm:$0xff]
    %v18 = vld [vmem:[%s1 + $0x8] sm:$0xff]
    %v19 = vld [vmem:[%s1 + $0x10] sm:$0xff]
    %v20 = vld [vmem:[%s1 + $0x18] sm:$0xff]
    %v21 = vld [vmem:[%s1 + $0x20] sm:$0xff]
    %v22 = vld [vmem:[%s1 + $0x28] sm:$0xff]
    %v23 = vld [vmem:[%s1 + $0x30] sm:$0xff]
    %v24 = vld [vmem:[%s1 + $0x38] sm:$0xff]
    %v25 = vld [vmem:[%s1 + $0x40] sm:$0xff]
    %v26 = vld [vmem:[%s1 + $0x48] sm:$0xff]
    %v27 = vld [vmem:[%s1 + $0x50] sm:$0xff]
    %v28 = vld [vmem:[%s1 + $0x58] sm:$0xff]
    %v29 = vld [vmem:[%s1 + $0x60] sm:$0xff]
    %v30 = vld [vmem:[%s1 + $0x68] sm:$0xff]
    %v31 = vld [vmem:[%s1 + $0x70] sm:$0xff]
    %v32 = vld [vmem:[%s1 + $0x78] sm:$0xff]
    %v33 = vld [vmem:[%s2] sm:$0x1]
    %v35 = vlaneseq
    %v36 = vshrl.u32 %v35, 7
    %v37 = vsub.s32 0, %v36
    %v38 = vrot.slane %v33, %v37
    %vm40 = vcmask 261120
    %v42 = vsel %vm40, %v15, 0
    %v45 = vsel %vm40, %v16, 0
    %v48 = vsel %vm40, %v17, 0
    %v51 = vsel %vm40, %v18, 0
    %v54 = vsel %vm40, %v19, 0
    %v57 = vsel %vm40, %v20, 0
    %v60 = vsel %vm40, %v21, 0
    %v63 = vsel %vm40, %v22, 0
    %v66 = vsel %vm40, %v23, 0
    %v69 = vsel %vm40, %v24, 0
    %v72 = vsel %vm40, %v25, 0
    %v75 = vsel %vm40, %v26, 0
    %v78 = vsel %vm40, %v27, 0
    %v81 = vsel %vm40, %v28, 0
    %v84 = vsel %vm40, %v29, 0
    %v87 = vsel %vm40, %v30, 0
    %v90 = vsel %vm40, %v31, 0
    %v93 = vsel %vm40, %v32, 0
    %95 = vmatprep.subr.mxu0 0.0
    %96 = vmatpush1.xpose.msra.mxu0 %v48
    %97 = vmatprep.subr.mxu0 0.0
    %98 = vmatpush1.xpose.msra.mxu0 %v51
    %99 = vmatprep.subr.mxu0 0.0
    %100 = vmatpush1.xpose.msra.mxu0 %v54
    %101 = vmatprep.subr.mxu0 0.0
    %102 = vmatpush1.xpose.msra.mxu0 %v57
    %103 = vmatprep.subr.mxu0 0.0
    %104 = vmatpush1.xpose.msra.mxu0 %v60
    %105 = vmatprep.subr.mxu0 0.0
    %106 = vmatpush1.xpose.msra.mxu0 %v63
    %107 = vmatprep.subr.mxu0 0.0
    %108 = vmatpush1.xpose.msra.mxu0 %v66
    %109 = vmatprep.subr.mxu0 0.0
    %110 = vmatpush1.xpose.msra.mxu0 %v69
    %111 = vmatprep.subr.mxu0 0.0
    %112 = vmatpush1.xpose.msra.mxu0 %v72
    %113 = vmatprep.subr.mxu0 0.0
    %114 = vmatpush1.xpose.msra.mxu0 %v75
    %115 = vmatprep.subr.mxu0 0.0
    %116 = vmatpush1.xpose.msra.mxu0 %v78
    %117 = vmatprep.subr.mxu0 0.0
    %118 = vmatpush1.xpose.msra.mxu0 %v81
    %119 = vmatprep.subr.mxu0 0.0
    %120 = vmatpush1.xpose.msra.mxu0 %v84
    %121 = vmatprep.subr.mxu0 0.0
    %122 = vmatpush1.xpose.msra.mxu0 %v87
    %123 = vmatprep.subr.mxu0 0.0
    %124 = vmatpush1.xpose.msra.mxu0 %v90
    %125 = vmatprep.subr.mxu0 0.0
    %126 = vmatpush1.xpose.msra.mxu0 %v93
    %127 = vmatprep.subr.mxu0 0.0
    %128 = vmatpush1.xpose.msra.mxu0 0.0
    %129 = vmatprep.subr.mxu0 0.0
    %130 = vmatpush1.xpose.msra.mxu0 0.0
    %131 = vmatprep.subr.mxu0 0.0
    %132 = vmatpush1.xpose.msra.mxu0 0.0
    %133 = vmatprep.subr.mxu0 0.0
    %134 = vmatpush1.xpose.msra.mxu0 0.0
    %135 = vmatprep.subr.mxu0 0.0
    %136 = vmatpush1.xpose.msra.mxu0 0.0
    %137 = vmatprep.subr.mxu0 0.0
    %138 = vmatpush1.xpose.msra.mxu0 0.0
    %139 = vmatprep.subr.mxu0 0.0
    %140 = vmatpush1.xpose.msra.mxu0 0.0
    %141 = vmatprep.subr.mxu0 0.0
    %142 = vmatpush1.xpose.msra.mxu0 0.0
    %143 = vmatprep.subr.mxu0 0.0
    %144 = vmatpush1.xpose.msra.mxu0 0.0
    %145 = vmatprep.subr.mxu0 0.0
    %146 = vmatpush1.xpose.msra.mxu0 0.0
    %147 = vmatprep.subr.mxu0 0.0
    %148 = vmatpush1.xpose.msra.mxu0 0.0
    %149 = vmatprep.subr.mxu0 0.0
    %150 = vmatpush1.xpose.msra.mxu0 0.0
    %151 = vmatprep.subr.mxu0 0.0
    %152 = vmatpush1.xpose.msra.mxu0 0.0
    %153 = vmatprep.subr.mxu0 0.0
    %154 = vmatpush1.xpose.msra.mxu0 0.0
    %155 = vmatprep.subr.mxu0 0.0
    %156 = vmatpush1.xpose.msra.mxu0 0.0
    %157 = vmatprep.subr.mxu0 0.0
    %158 = vmatpush1.xpose.msra.mxu0 0.0
    %159 = vmatprep.mubr.f32.mxu0 0.0
    %160 = vmatmul.mubr.f32.gmra.mrb[0].mxu0 %v42
    %v161 = vpop.f32.mrb[0].mxu0
    %v162 = vadd.f32 %v38, %v161
    %v163 = vpop.f32.mrb[0].mxu0
    %164 = vmatprep.mubr.f32.mxu0 0.0
    %165 = vmatmul.mubr.f32.gmra.mrb[0].mxu0 %v45
    %v166 = vpop.f32.mrb[0].mxu0
    %v167 = vadd.f32 %v38, %v166
    %v168 = vpop.f32.mrb[0].mxu0
    %169 = vdwg.mxu0
    %170 = vst [vmem:[#allocation2] sm:$0xff] %v162
    %171 = vst [vmem:[#allocation2 + $0x8] sm:$0xff] %v167
    // Predicated region
    $region14: #{tpu_custom_call.1} parent=1 // pred_check
      _
    $region15: #{tpu_custom_call.1} parent=1 // pred_check_branch
      %173 = sbr.rel (0) target = $region17
    $region16: #{tpu_custom_call.1} parent=1 // pred_region
      %s175 = ssub.s32 256, 256
      %176 = vsyncadd [#allocation3], %s175
      %s177 = sshll.u32 [#allocation2], 4
      %s178 = int_to_ptr.vmem [resolvable:$true] %s177
      %183 = dma.vmem_to_hbm [thread:$0]  %s178, 256, %s3, [#allocation3], 128, 128, 8
    $region17: #{tpu_custom_call.1} parent=1 // pred_fallthru
      _
    // Predicated region
    $region18: #{tpu_custom_call.1} parent=1 // pred_check
      _
    $region19: #{tpu_custom_call.1} parent=1 // pred_check_branch
      %185 = sbr.rel (0) target = $region21
    $region20: #{tpu_custom_call.1} parent=1 // pred_region
      %186 = dma.done [#allocation3], 256
    $region21: #{tpu_custom_call.1} parent=1 // pred_fallthru
      _
    %187 = vsyncpa [#allocation3], 1

</llo_original>
